<compile_context>
chip_gen: v7x
topology: tpu7x:2x2x1
jax: 0.10.0
libtpu: 0.0.40
codegen_flags: <defaults>
</compile_context>

<pallas_src>
import jax
import jax.numpy as jnp
from jax.experimental import pallas as pl
from jax.experimental.pallas import tpu as pltpu


def _orthogonal_fusion_kernel(g_ref, l_ref, out_ref):
    # g_ref  : (1, C, 1)      global feature (column layout), per batch element
    # l_ref  : (1, C, TS)     lane-dense local-feature tile
    # out_ref: (1, 2, C, TS)  part 0 = broadcast global, part 1 = orthogonal comp
    C = l_ref.shape[1]
    TS = l_ref.shape[2]

    g = g_ref[0]                                    # (C, 1), native dtype
    l = l_ref[0]                                    # (C, TS), native dtype
    g32 = g.astype(jnp.float32)                     # tiny (C, 1) upcast

    # 1/||g||^2 (exact reciprocal). O(C) work per tile -- negligible vs the
    # O(C*TS) elementwise work, so no cross-tile hoisting is needed.
    norm_sq = jnp.sum(g32 * g32, axis=(0, 1), keepdims=True)          # (1, 1)
    inv_norm_sq = pl.reciprocal(norm_sq, approx=False)                 # (1, 1)

    # Per-column projection coefficient, accumulated in f32, with 1/||g||^2
    # folded into the small (1, TS) vector instead of the (C, TS) tensor.
    coeff = jnp.sum(g32 * l.astype(jnp.float32), axis=0, keepdims=True)
    coeff = coeff * inv_norm_sq                                        # (1, TS)

    # Projection in f32, single cast back; subtract in the native dtype so the
    # big (C, TS) tile is never upcast on the subtract/store path.
    proj = (g32 * coeff).astype(l.dtype)                               # (C, TS)

    out_ref[0, 0] = jnp.broadcast_to(g, (C, TS)).astype(out_ref.dtype)
    out_ref[0, 1] = (l - proj).astype(out_ref.dtype)


def _pick_tile_hw(HW, C, itemsize, *, vmem_budget=12 << 20, max_ts=2048):
    """Pick the spatial tile width TS (multiple of 128).

    Largest TS whose per-step working set (double-buffered in/out blocks plus
    f32 temporaries) fits `vmem_budget`, scaled so each step moves >= ~1 MiB of
    input when possible, then minimizing the masked remainder of the final
    (partial) tile.
    """
    def step_bytes(ts):
        # double-buffered input (C*ts) + output (2C*ts) blocks + ~2 f32 temps
        return 2 * (3 * C * ts) * itemsize + 2 * C * ts * 4

    hw_ceil = pl.cdiv(HW, 128) * 128            # no point tiling wider than the row
    cap = min(max_ts, hw_ceil)
    ts_cap = 128
    while ts_cap + 128 <= cap and step_bytes(ts_cap + 128) <= vmem_budget:
        ts_cap += 128

    # Prefer >= ~1 MiB of input per step (per-step pipeline overhead ~0.35 us),
    # unless capped below that by VMEM budget / row width.
    ts_min = 128
    while ts_min < ts_cap and C * ts_min * itemsize < (1 << 20):
        ts_min += 128

    best_ts, best_key = ts_min, None
    for ts in range(ts_min, ts_cap + 1, 128):
        key = (pl.cdiv(HW, ts) * ts - HW, -ts)   # min waste, then fewer steps
        if best_key is None or key < best_key:
            best_ts, best_key = ts, key
    return best_ts


def orthogonal_fusion(local_feat, global_feat, *, tile_hw=None):
    """local_feat: (B, C, H, W), global_feat: (B, C) -> (B, 2C, H, W)."""
    B, C, H, W = local_feat.shape
    HW = H * W
    dtype = local_feat.dtype
    itemsize = dtype.itemsize

    if tile_hw is None:
        TS = _pick_tile_hw(HW, C, itemsize)
    else:
        TS = max(128, (int(tile_hw) // 128) * 128)
    num_tiles = pl.cdiv(HW, TS)                  # final tile may be partial (masked)

    l = local_feat.reshape(B, C, HW)                     # free reshape
    g_col = global_feat.astype(dtype).reshape(B, C, 1)   # column layout, no in-kernel relayout

    cost = pl.CostEstimate(
        flops=6 * B * C * HW + 4 * B * C,
        transcendentals=0,
        bytes_accessed=int(itemsize * (3 * B * C * HW + B * C)),
    )

    out = pl.pallas_call(
        _orthogonal_fusion_kernel,
        out_shape=jax.ShapeDtypeStruct((B, 2, C, HW), dtype),
        grid_spec=pltpu.PrefetchScalarGridSpec(
            num_scalar_prefetch=0,
            grid=(B, num_tiles),
            in_specs=[
                pl.BlockSpec((1, C, 1), lambda b, s: (b, 0, 0)),     # global feat
                pl.BlockSpec((1, C, TS), lambda b, s: (b, 0, s)),    # local tile
            ],
            out_specs=pl.BlockSpec((1, 2, C, TS), lambda b, s: (b, 0, 0, s)),
        ),
        compiler_params=pltpu.CompilerParams(
            dimension_semantics=("parallel", "parallel"),
            vmem_limit_bytes=48 * 1024 * 1024,
        ),
        cost_estimate=cost,
    )(g_col, l)

    # (B, 2, C, HW) -> (B, 2C, H, W): adjacent-dim merge/split, free bitcast
    # reshape. Channels [0:C] = broadcast global, [C:2C] = orthogonal component,
    # matching torch.cat([global, ortho], dim=1).
    return out.reshape(B, 2 * C, H, W)


def _reference(local_feat, global_feat):
    """Pure-jnp reference (elementwise f32, no MXU precision surprises)."""
    B, C, H, W = local_feat.shape
    l = local_feat.reshape(B, C, H * W).astype(jnp.float32)
    g = global_feat.astype(jnp.float32)
    norm_sq = jnp.sum(g * g, axis=1)                                    # (B,)
    coeff = jnp.sum(g[:, :, None] * l, axis=1)                          # (B, HW)
    proj = g[:, :, None] * coeff[:, None, :] / norm_sq[:, None, None]   # (B, C, HW)
    ortho = (l - proj).reshape(B, C, H, W)
    g_exp = jnp.broadcast_to(g[:, :, None, None], (B, C, H, W))
    return jnp.concatenate([g_exp, ortho], axis=1)


if __name__ == "__main__":
    key = jax.random.PRNGKey(0)
    k1, k2 = jax.random.split(key)

    # Case 1: base shapes (B=2, C=4, H=W=16), f32, single aligned tile.
    local_feat = jax.random.normal(k1, (2, 4, 16, 16), dtype=jnp.float32)
    global_feat = jax.random.normal(k2, (2, 4), dtype=jnp.float32)
    out = jax.block_until_ready(orthogonal_fusion(local_feat, global_feat))
    ref = _reference(local_feat, global_feat)
    assert out.shape == (2, 8, 16, 16), out.shape
    assert jnp.allclose(out, ref, atol=1e-5, rtol=1e-5), "mismatch (f32, aligned)"

    # Case 2: non-128-aligned spatial size with a forced multi-tile grid so the
    # masked partial final block path is exercised (H=W=13 -> HW=169, TS=128).
    local_odd = jax.random.normal(k1, (2, 4, 13, 13), dtype=jnp.float32)
    out_odd = jax.block_until_ready(
        orthogonal_fusion(local_odd, global_feat, tile_hw=128))
    ref_odd = _reference(local_odd, global_feat)
    assert out_odd.shape == (2, 8, 13, 13), out_odd.shape
    assert jnp.allclose(out_odd, ref_odd, atol=1e-5, rtol=1e-5), "mismatch (partial tile)"

    # Case 3: bf16 inputs exercise the native-dtype subtract / f32 coeff path.
    local_bf = local_feat.astype(jnp.bfloat16)
    global_bf = global_feat.astype(jnp.bfloat16)
    out_bf = jax.block_until_ready(orthogonal_fusion(local_bf, global_bf))
    ref_bf = _reference(local_bf.astype(jnp.float32), global_bf.astype(jnp.float32))
    assert out_bf.shape == (2, 8, 16, 16), out_bf.shape
    assert out_bf.dtype == jnp.bfloat16, out_bf.dtype
    assert jnp.allclose(out_bf.astype(jnp.float32), ref_bf, atol=1e-1, rtol=1e-1), \
        "mismatch (bf16)"

    print("KERNEL_OK")
</pallas_src>

<mosaic_0001>
module attributes {stable_mosaic.version = 11 : i64} {
  func.func @_orthogonal_fusion_kernel(%arg0: i32, %arg1: i32, %arg2: memref<1x4x1xf32, #tpu.memory_space<vmem>>, %arg3: memref<1x4x256xf32, #tpu.memory_space<vmem>>, %arg4: memref<1x2x4x256xf32, #tpu.memory_space<vmem>>) attributes {dimension_semantics = [#tpu.dimension_semantics<parallel>, #tpu.dimension_semantics<parallel>], iteration_bounds = array<i64: 2, 1>, scalar_prefetch = 0 : i64, scratch_operands = 0 : i64, tpu.core_type = #tpu.core_type<tc>, window_params = [{transform_indices = @transform_0, window_bounds = array<i64: 1, 4, 1>}, {transform_indices = @transform_1, window_bounds = array<i64: 1, 4, 256>}, {transform_indices = @transform_2, window_bounds = array<i64: 1, 2, 4, 256>}]} {
    %c0 = arith.constant 0 : index
    %c0_0 = arith.constant 0 : index
    %c0_1 = arith.constant 0 : index
    %0 = vector.load %arg2[%c0, %c0_0, %c0_1] : memref<1x4x1xf32, #tpu.memory_space<vmem>>, vector<1x4x1xf32>
    %1 = vector.shape_cast %0 : vector<1x4x1xf32> to vector<4x1xf32>
    %c0_2 = arith.constant 0 : index
    %c0_3 = arith.constant 0 : index
    %c0_4 = arith.constant 0 : index
    %2 = vector.load %arg3[%c0_2, %c0_3, %c0_4] : memref<1x4x256xf32, #tpu.memory_space<vmem>>, vector<1x4x256xf32>
    %3 = vector.shape_cast %2 : vector<1x4x256xf32> to vector<4x256xf32>
    %4 = arith.mulf %1, %1 : vector<4x1xf32>
    %5 = vector.shape_cast %4 : vector<4x1xf32> to vector<1x4x1xf32>
    %cst = arith.constant dense<0.000000e+00> : vector<1xf32>
    %6 = vector.multi_reduction <add>, %5, %cst [1, 2] : vector<1x4x1xf32> to vector<1xf32>
    %7 = vector.shape_cast %6 : vector<1xf32> to vector<1x1x1xf32>
    %8 = vector.extract %7[0, 0, 0] : f32 from vector<1x1x1xf32>
    %9 = vector.broadcast %8 : f32 to vector<1x1xf32>
    %10 = tpu.reciprocal %9 : vector<1x1xf32> -> vector<1x1xf32>
    %11 = vector.broadcast %1 : vector<4x1xf32> to vector<4x256xf32>
    %12 = arith.mulf %11, %3 : vector<4x256xf32>
    %cst_5 = arith.constant dense<0.000000e+00> : vector<256xf32>
    %13 = vector.multi_reduction <add>, %12, %cst_5 [0] : vector<4x256xf32> to vector<256xf32>
    %14 = vector.shape_cast %13 : vector<256xf32> to vector<1x256xf32>
    %15 = vector.broadcast %10 : vector<1x1xf32> to vector<1x256xf32>
    %16 = arith.mulf %14, %15 : vector<1x256xf32>
    %17 = vector.broadcast %1 : vector<4x1xf32> to vector<4x256xf32>
    %18 = vector.broadcast %16 : vector<1x256xf32> to vector<4x256xf32>
    %19 = arith.mulf %17, %18 : vector<4x256xf32>
    %20 = vector.shape_cast %1 : vector<4x1xf32> to vector<4x1xf32>
    %21 = vector.broadcast %20 : vector<4x1xf32> to vector<4x256xf32>
    %c0_6 = arith.constant 0 : index
    %c0_7 = arith.constant 0 : index
    %c0_8 = arith.constant 0 : index
    %c0_9 = arith.constant 0 : index
    %22 = vector.load %arg4[%c0_6, %c0_7, %c0_8, %c0_9] : memref<1x2x4x256xf32, #tpu.memory_space<vmem>>, vector<1x1x4x256xf32>
    %23 = vector.shape_cast %22 : vector<1x1x4x256xf32> to vector<4x256xf32>
    %24 = vector.shape_cast %21 : vector<4x256xf32> to vector<1x1x4x256xf32>
    tpu.vector_store %arg4[%c0_6, %c0_7, %c0_8, %c0_9], %24 {strides = array<i32>} : memref<1x2x4x256xf32, #tpu.memory_space<vmem>>, vector<1x1x4x256xf32>,
    %25 = arith.subf %3, %19 : vector<4x256xf32>
    %c0_10 = arith.constant 0 : index
    %c1 = arith.constant 1 : index
    %c0_11 = arith.constant 0 : index
    %c0_12 = arith.constant 0 : index
    %26 = vector.load %arg4[%c0_10, %c1, %c0_11, %c0_12] : memref<1x2x4x256xf32, #tpu.memory_space<vmem>>, vector<1x1x4x256xf32>
    %27 = vector.shape_cast %26 : vector<1x1x4x256xf32> to vector<4x256xf32>
    %28 = vector.shape_cast %25 : vector<4x256xf32> to vector<1x1x4x256xf32>
    tpu.vector_store %arg4[%c0_10, %c1, %c0_11, %c0_12], %28 {strides = array<i32>} : memref<1x2x4x256xf32, #tpu.memory_space<vmem>>, vector<1x1x4x256xf32>,
    return
  }
  func.func @transform_0(%arg0: i32, %arg1: i32) -> (i32, i32, i32) {
    %c0_i32 = arith.constant 0 : i32
    %c0_i32_0 = arith.constant 0 : i32
    %c0_i32_1 = arith.constant 0 : i32
    return %arg0, %c0_i32, %c0_i32_0 : i32, i32, i32
  }
  func.func @transform_1(%arg0: i32, %arg1: i32) -> (i32, i32, i32) {
    %c0_i32 = arith.constant 0 : i32
    %c0_i32_0 = arith.constant 0 : i32
    return %arg0, %c0_i32, %arg1 : i32, i32, i32
  }
  func.func @transform_2(%arg0: i32, %arg1: i32) -> (i32, i32, i32, i32) {
    %c0_i32 = arith.constant 0 : i32
    %c0_i32_0 = arith.constant 0 : i32
    %c0_i32_1 = arith.constant 0 : i32
    return %arg0, %c0_i32, %c0_i32_0, %arg1 : i32, i32, i32, i32
  }
}

</mosaic_0001>

<llo_original>
// kernel: tpu_custom_call.1
$region0: #{tpu_custom_call.1}
  #allocation0 [shape = 'u32[]', space=smem, size = 0x4, offset = 0x4, fixed_abs, tag = 'smem constant byte address 0x4 - core index']
  #allocation1 [shape = 'u32[144,128]{1,0:T(1,128)}', space=vmem, size = 0x12000, scoped, tag = 'internal scratch']
  %s0 = inlined_call_operand.vmem [shape: f32[2,4,1], index: 0, kind: input, shape index: {}]
  %s1 = inlined_call_operand.hbm [shape: f32[2,4,256], index: 1, kind: input, shape index: {}]
  %s2 = inlined_call_operand.hbm [shape: f32[2,2,4,256], index: 2, kind: output, shape index: {}]
  %s3 = sld [smem:[#allocation0]]
  $region45: #{tpu_custom_call.1} parent=0
    _
  %s5 = ssub.s32 1, %s3
  %s6 = scalar_select 0, %s5, %s3
  $region1: #{tpu_custom_call.1} parent=0
    #allocation2 [shape = 'u8[8192]{0}', space=vmem, size = 0x2000, scoped, tag = 'input window, operand 1']
    #allocation3 [shape = 's32[2]{0}', space=sflag, size = 0x8, scoped, tag = 'scoped memory for tpu_custom_call.1']
    #allocation4 [shape = 's32[2]{0}', space=sflag, size = 0x8, scoped, tag = 'scoped memory for tpu_custom_call.1']
    #allocation5 [shape = 'u8[16384]{0}', space=vmem, size = 0x4000, scoped, tag = 'output window, operand 0']
    %7 = vsyncpa [#allocation3], 0
    %s8 = scalar_lea.sflag [#allocation3], 1
    %9 = vsyncpa %s8, 0
    %10 = vsyncpa [#allocation4], 0
    %s11 = scalar_lea.sflag [#allocation4], 1
    %12 = vsyncpa %s11, 0
    loop: start=0, step=1, limit=4
    $region2: #{tpu_custom_call.1} parent=1 // loop_pre_header
      _
    $region3: #{tpu_custom_call.1} parent=1 // loop_header
      %s14 = sphi 0, %s18
      %p15 = scmp.ge.s32.totalorder %s14, 4
      %s21 = sphi 0, %s33
      %s22 = sphi 0, %s29
      %s23 = sphi 0, %s21
      %s24 = sphi 0, %s22
      %s25 = sphi 0, %s23
      %s26 = sphi 0, %s24
      %s36 = sphi 0, %s38
      %s39 = sphi 0, %s36
      %s40 = sphi 0, %s39
      %s56 = sphi 0, %s40
      %s64 = sphi 0, %s66
      %s67 = sphi 0, %s64
      %s68 = sphi 0, %s67
      %s84 = sphi 0, %s68
      %s92 = sphi 0, %s94
      %s95 = sphi 0, %s92
      %s96 = sphi 0, %s95
      %s112 = sphi 0, %s96
    $region4: #{tpu_custom_call.1} parent=1 // loop_header_branch
      %17 = sbr.rel (%p15) target = $region8
    $region5: #{tpu_custom_call.1} parent=1 // loop_body
      %s19 = ssub.s32 %s14, 1
      %s20 = ssub.s32 %s14, 2
      %s27 = sadd.s32 1, %s22
      %p28 = scmp.ge.s32.totalorder %s27, 1
      %s29 = scalar_select %p28, 0, %s27
      %s30 = sadd.s32 1, %s21
      %s31 = scalar_select %p28, %s30, %s21
      %p32 = scmp.ge.s32.totalorder %s31, 2
      %s33 = scalar_select %p32, 0, %s31
      %s34 = ssub.s32 %s21, %s33
      %p35 = scmp.eq.s32.totalorder %s34, 0
      %s37 = sadd.s32 %s36, 1
      %s38 = scalar_select %p35, %s36, %s37
      %p41 = pneg %p35
      %p42 = scmp.eq.s32.totalorder %s14, 1
      %p43 = por %p41, %p42
      %p44 = scmp.ne.s32.totalorder %s36, %s39
      %p45 = scmp.eq.s32.totalorder %s14, 0
      %p46 = por %p44, %p45
      %p47 = scmp.ne.s32.totalorder %s36, %s39
      %p48 = scmp.eq.s32.totalorder %s19, 1
      %p49 = por %p47, %p48
      %p50 = scmp.ne.s32.totalorder %s39, %s40
      %p51 = scmp.eq.s32.totalorder %s19, 0
      %p52 = por %p50, %p51
      %p53 = scmp.ne.s32.totalorder %s39, %s40
      %p54 = scmp.eq.s32.totalorder %s20, 1
      %p55 = por %p53, %p54
      %p57 = scmp.ne.s32.totalorder %s40, %s56
      %p58 = scmp.eq.s32.totalorder %s20, 0
      %p59 = por %p57, %p58
      %s60 = ssub.s32 %s21, %s33
      %s61 = ssub.s32 %s22, %s29
      %s62 = sor.u32 %s60, %s61
      %p63 = scmp.eq.s32.totalorder %s62, 0
      %s65 = sadd.s32 %s64, 1
      %s66 = scalar_select %p63, %s64, %s65
      %p69 = pneg %p63
      %p70 = scmp.eq.s32.totalorder %s14, 1
      %p71 = por %p69, %p70
      %p72 = scmp.ne.s32.totalorder %s64, %s67
      %p73 = scmp.eq.s32.totalorder %s14, 0
      %p74 = por %p72, %p73
      %p75 = scmp.ne.s32.totalorder %s64, %s67
      %p76 = scmp.eq.s32.totalorder %s19, 1
      %p77 = por %p75, %p76
      %p78 = scmp.ne.s32.totalorder %s67, %s68
      %p79 = scmp.eq.s32.totalorder %s19, 0
      %p80 = por %p78, %p79
      %p81 = scmp.ne.s32.totalorder %s67, %s68
      %p82 = scmp.eq.s32.totalorder %s20, 1
      %p83 = por %p81, %p82
      %p85 = scmp.ne.s32.totalorder %s68, %s84
      %p86 = scmp.eq.s32.totalorder %s20, 0
      %p87 = por %p85, %p86
      %s88 = ssub.s32 %s21, %s33
      %s89 = ssub.s32 %s22, %s29
      %s90 = sor.u32 %s88, %s89
      %p91 = scmp.eq.s32.totalorder %s90, 0
      %s93 = sadd.s32 %s92, 1
      %s94 = scalar_select %p91, %s92, %s93
      %p97 = pneg %p91
      %p98 = scmp.eq.s32.totalorder %s14, 1
      %p99 = por %p97, %p98
      %p100 = scmp.ne.s32.totalorder %s92, %s95
      %p101 = scmp.eq.s32.totalorder %s14, 0
      %p102 = por %p100, %p101
      %p103 = scmp.ne.s32.totalorder %s92, %s95
      %p104 = scmp.eq.s32.totalorder %s19, 1
      %p105 = por %p103, %p104
      %p106 = scmp.ne.s32.totalorder %s95, %s96
      %p107 = scmp.eq.s32.totalorder %s19, 0
      %p108 = por %p106, %p107
      %p109 = scmp.ne.s32.totalorder %s95, %s96
      %p110 = scmp.eq.s32.totalorder %s20, 1
      %p111 = por %p109, %p110
      %p113 = scmp.ne.s32.totalorder %s96, %s112
      %p114 = scmp.eq.s32.totalorder %s20, 0
      %p115 = por %p113, %p114
      %p116 = scmp.le.s32.totalorder 1, %s14
      %p117 = scmp.lt.s32.totalorder %s14, 3
      %p118 = pnand %p116, %p117
      %p119 = pneg %p118
      // Predicated region
      $region9: #{tpu_custom_call.1} parent=5 // pred_check
        _
      $region10: #{tpu_custom_call.1} parent=5 // pred_check_branch
        %121 = sbr.rel (%p118) target = $region12
      $region11: #{tpu_custom_call.1} parent=5 // pred_region
        %s122 = ssub.s32 %s14, 1
      $region12: #{tpu_custom_call.1} parent=5 // pred_fallthru
        _
      %p123 = scmp.lt.s32.totalorder %s14, 2
      // Predicated region
      $region13: #{tpu_custom_call.1} parent=5 // pred_check
        %p124 = pneg %p123
      $region14: #{tpu_custom_call.1} parent=5 // pred_check_branch
        %126 = sbr.rel (%p124) target = $region16
      $region15: #{tpu_custom_call.1} parent=5 // pred_region
        // Predicated region
        $region17: #{tpu_custom_call.1} parent=15 // pred_check
          %p127 = pneg %p46
        $region18: #{tpu_custom_call.1} parent=15 // pred_check_branch
          %129 = sbr.rel (%p127) target = $region20
        $region19: #{tpu_custom_call.1} parent=15 // pred_region
          %p130 = scmp.lt.s32.totalorder %s21, 1
          %s131 = scalar_select %p130, %s21, 1
          %s132 = smul.addr %s131, 4
          %s133 = scalar_lea.vmem %s0, %s132
        $region20: #{tpu_custom_call.1} parent=15 // pred_fallthru
          _
        // Predicated region
        $region21: #{tpu_custom_call.1} parent=15 // pred_check
          %p134 = pneg %p74
        $region22: #{tpu_custom_call.1} parent=15 // pred_check_branch
          %136 = sbr.rel (%p134) target = $region24
        $region23: #{tpu_custom_call.1} parent=15 // pred_region
          %s137 = sand.u32 %s64, 1
          %s138 = scalar_lea.sflag [#allocation3], %s137
          %s139 = sand.u32 %s64, 1
          %s140 = smul.addr %s139, 8
          %s141 = scalar_lea.vmem [#allocation2], %s140
          %s142 = smul.u32 2, %s22
          %s144 = ssub.s32 128, 128
          %145 = vsyncadd %s138, %s144
          %s146 = smul.addr %s21, 2
          %s147 = sadd.s32 %s142, %s146
          %s148 = smul.addr %s147, 64
          %s149 = scalar_lea.hbm %s1, %s148
          %s151 = sshll.u32 %s141, 4
          %s152 = int_to_ptr.vmem [resolvable:$true] %s151
          %154 = dma.hbm_to_vmem [thread:$0]  %s149, 128, %s152, %s138
        $region24: #{tpu_custom_call.1} parent=15 // pred_fallthru
          _
      $region16: #{tpu_custom_call.1} parent=5 // pred_fallthru
        _
      %p155 = scmp.le.s32.totalorder 1, %s14
      %p156 = scmp.lt.s32.totalorder %s14, 3
      %p157 = pnand %p155, %p156
      %p158 = pneg %p157
      // Predicated region
      $region25: #{tpu_custom_call.1} parent=5 // pred_check
        _
      $region26: #{tpu_custom_call.1} parent=5 // pred_check_branch
        %160 = sbr.rel (%p157) target = $region28
      $region27: #{tpu_custom_call.1} parent=5 // pred_region
        %s161 = ssub.s32 %s14, 1
        %s162 = sand.u32 %s67, 1
        %s163 = scalar_lea.sflag [#allocation3], %s162
        %s164 = sand.u32 %s67, 1
        %s165 = smul.addr %s164, 8
        %s166 = scalar_lea.vmem [#allocation2], %s165
        // Predicated region
        $region29: #{tpu_custom_call.1} parent=27 // pred_check
          %p167 = pneg %p80
        $region30: #{tpu_custom_call.1} parent=27 // pred_check_branch
          %169 = sbr.rel (%p167) target = $region32
        $region31: #{tpu_custom_call.1} parent=27 // pred_region
          %170 = dma.done %s163, 128
        $region32: #{tpu_custom_call.1} parent=27 // pred_fallthru
          _
        %p171 = scmp.lt.s32.totalorder %s23, 1
        %s172 = scalar_select %p171, %s23, 1
        %s173 = smul.addr %s172, 4
        %s174 = scalar_lea.vmem %s0, %s173
        %p175 = pneg %p52
        %p176 = pneg %p49
        %s177 = sand.u32 %s67, 1
        %s178 = scalar_lea.sflag [#allocation3], %s177
        %s179 = sand.u32 %s67, 1
        %s180 = smul.addr %s179, 8
        %s181 = scalar_lea.vmem [#allocation2], %s180
        %p182 = pneg %p80
        %p183 = pneg %p77
        %p184 = pneg %p108
        %p185 = pneg %p105
        %s186 = sand.u32 %s95, 1
        %s187 = scalar_lea.sflag [#allocation4], %s186
        %s188 = sand.u32 %s95, 1
        %s189 = smul.addr %s188, 16
        %s190 = scalar_lea.vmem [#allocation5], %s189
        %p191 = scmp.lt.s32.totalorder %s23, 1
        %s192 = scalar_select %p191, %s23, 1
        %s193 = smul.addr %s192, 4
        %s194 = scalar_lea.vmem %s0, %s193
        %s195 = smul.u32 2, %s24
        %s196 = smul.u32 2, %s24
        %v197 = vld [vmem:[%s194] sm:$0xf]
        %v198 = vld [vmem:[%s166] sm:$0xff]
        %v199 = vmul.f32 %v197, %v197
        %vm200 = vcmask 3072
        %v201 = vsel %vm200, %v199, 0.0
        %202 = vadd.xlane.f32.xlu0 %v201
        %v203 = vpop.xlane.xlu0 %202
        %v204 = vrot.slane %v203, 4
        %v205 = vadd.f32 %v203, %v204
        %v206 = vrot.slane %v205, 2
        %v207 = vadd.f32 %v205, %v206
        %v208 = vrot.slane %v207, 1
        %v209 = vadd.f32 %v207, %v208
        %s210 = vtos %v209
        %v211 = vstv %s210
        %v212 = vrcp.pop %v211
        %214 = vset.pattern.permute.xlu0 0
        %215 = vperm.xlu0 %214, %v197
        %v216 = vpop.permute.xlu0 %215
        %v219 = vcombine.high %v198, %v198
        %v221 = vmul.f32 %v216, %v198
        %v222 = vmul.f32 %v216, %v219
        %vm223 = vcmask 1043456
        %v224 = vsel %vm223, %v221, 0.0
        %v225 = vrot.slane %v224, 4
        %v226 = vadd.f32 %v224, %v225
        %v227 = vrot.slane %v226, 2
        %v228 = vadd.f32 %v226, %v227
        %v229 = vrot.slane %v228, 1
        %v230 = vadd.f32 %v228, %v229
        %v231 = vsel %vm223, %v222, 0.0
        %v232 = vrot.slane %v231, 4
        %v233 = vadd.f32 %v231, %v232
        %v234 = vrot.slane %v233, 2
        %v235 = vadd.f32 %v233, %v234
        %v236 = vrot.slane %v235, 1
        %v237 = vadd.f32 %v235, %v236
        %v238 = vmul.f32 %v230, %v212
        %v239 = vmul.f32 %v237, %v212
        %v240 = vmul.f32 %v216, %v238
        %v241 = vmul.f32 %v216, %v239
        %v243 = vunpack.c.l.s4 839922192
        %v244 = vunpack.c.0.s8 %v243
        %v245 = vlaneseq
        %v246 = vshrl.u32 %v245, 7
        %v247 = vsub.s32 %v244, %v246
        %v248 = vrot.slane %v216, %v247
        %250 = vst [vmem:[%s190] sm:$0xff] %v248
        %v253 = vcombine.low %v240, %v241
        %v255 = vsub.f32 %v198, %v253
        %s256 = scalar_lea.vmem %s190, 8 [#allocation5]
        %257 = vst [vmem:[%s256] sm:$0xff] %v255
        %s258 = sand.u32 %s95, 1
        %s259 = scalar_lea.sflag [#allocation4], %s258
        %s260 = sand.u32 %s95, 1
        %s261 = smul.addr %s260, 16
        %s262 = scalar_lea.vmem [#allocation5], %s261
        // Predicated region
        $region33: #{tpu_custom_call.1} parent=27 // pred_check
          %p263 = pneg %p105
        $region34: #{tpu_custom_call.1} parent=27 // pred_check_branch
          %265 = sbr.rel (%p263) target = $region36
        $region35: #{tpu_custom_call.1} parent=27 // pred_region
          %s266 = smul.u32 2, %s24
          %s268 = ssub.s32 256, 256
          %269 = vsyncadd %s259, %s268
          %s270 = smul.addr %s23, 4
          %s271 = sadd.s32 %s266, %s270
          %s272 = smul.addr %s271, 64
          %s273 = scalar_lea.hbm %s2, %s272
          %s274 = sshll.u32 %s262, 4
          %s275 = int_to_ptr.vmem [resolvable:$true] %s274
          %280 = dma.vmem_to_hbm [thread:$0]  %s275, 256, %s273, %s259, 128, 128, 8
        $region36: #{tpu_custom_call.1} parent=27 // pred_fallthru
          _
      $region28: #{tpu_custom_call.1} parent=5 // pred_fallthru
        _
      %p281 = scmp.le.s32.totalorder 2, %s14
      // Predicated region
      $region37: #{tpu_custom_call.1} parent=5 // pred_check
        %p282 = pneg %p281
      $region38: #{tpu_custom_call.1} parent=5 // pred_check_branch
        %284 = sbr.rel (%p282) target = $region40
      $region39: #{tpu_custom_call.1} parent=5 // pred_region
        %s285 = ssub.s32 %s14, 2
        // Predicated region
        $region41: #{tpu_custom_call.1} parent=39 // pred_check
          %p286 = pneg %p111
        $region42: #{tpu_custom_call.1} parent=39 // pred_check_branch
          %288 = sbr.rel (%p286) target = $region44
        $region43: #{tpu_custom_call.1} parent=39 // pred_region
          %s289 = sand.u32 %s96, 1
          %s290 = scalar_lea.sflag [#allocation4], %s289
          %s291 = sand.u32 %s96, 1
          %s292 = smul.addr %s291, 16
          %s293 = scalar_lea.vmem [#allocation5], %s292
          %294 = dma.done %s290, 256
        $region44: #{tpu_custom_call.1} parent=39 // pred_fallthru
          _
      $region40: #{tpu_custom_call.1} parent=5 // pred_fallthru
        _
    $region6: #{tpu_custom_call.1} parent=1 // loop_footer
      %s18 = sadd.s32 1, %s14
    $region7: #{tpu_custom_call.1} parent=1 // loop_footer_branch
      %13 = sbr.rel target = $region3
    $region8: #{tpu_custom_call.1} parent=1 // loop_exit
      _
    %295 = vsyncpa [#allocation3], 1
    %s296 = scalar_lea.sflag [#allocation3], 1
    %297 = vsyncpa %s296, 1
    %298 = vsyncpa [#allocation4], 1
    %s299 = scalar_lea.sflag [#allocation4], 1
    %300 = vsyncpa %s299, 1

</llo_original>
